<compile_context>
chip_gen: v6e
topology: v6e:2x2x1
jax: 0.10.0
libtpu: 0.0.40
codegen_flags: <defaults>
</compile_context>

<pallas_src>
import functools

import jax
import jax.numpy as jnp
from jax.experimental import pallas as pl
from jax.experimental.pallas import tpu as pltpu

_LANE = 128   # lane width: last dims padded to a multiple of this
_SUBLANE = 8  # sublane width: M tiles are multiples of this


def _leaky(x, alpha):
    return jnp.where(x >= 0, x, alpha * x)


def _round_up(v, m):
    return ((v + m - 1) // m) * m


def _cdiv(a, b):
    return -(-a // b)


# ----------------------------------------------------------------------------
# Fused 2-layer MLP kernel: (tm, Kp) x-tile -> (tm, Hp) output tile
# ----------------------------------------------------------------------------
def _mlp2_kernel(x_ref, w1_ref, b1_ref, w2_ref, b2_ref, o_ref, *, alpha):
    # layer 1: bf16 MXU matmul, f32 accumulate, f32 epilogue
    x_bf = x_ref[...].astype(jnp.bfloat16)
    h = jnp.dot(x_bf, w1_ref[...], preferred_element_type=jnp.float32)
    h = _leaky(h + b1_ref[...], alpha)
    # layer 2: hidden stays in VMEM, re-cast to bf16 for the MXU
    y = jnp.dot(h.astype(jnp.bfloat16), w2_ref[...],
                preferred_element_type=jnp.float32)
    y = _leaky(y + b2_ref[...], alpha)
    o_ref[...] = y.astype(o_ref.dtype)


# ----------------------------------------------------------------------------
# Tiling: pad M only to sublane granularity, grid evenly divides, grid>=2 when
# there is enough work so the v7x megacore "parallel" axis actually splits.
# ----------------------------------------------------------------------------
def _choose_tiling(M, tm):
    m8 = _round_up(max(M, 1), _SUBLANE)
    min_grid = 2 if m8 >= 2 * _SUBLANE else 1
    grid_n = max(_cdiv(m8, tm), min_grid)
    tm_eff = _round_up(_cdiv(m8, grid_n), _SUBLANE)
    Mp = grid_n * tm_eff
    return Mp, tm_eff, grid_n


def mnist_generator_forward(params, x, *, alpha=0.2, tm=512):
    """Fused Pallas forward pass for MNIST_Generator.

    x: (M, latent_size) f32.  Returns (M, out_channels) f32.
    Uses the pre-padded bf16 weights / f32 biases produced at init time.
    """
    w1_p, b1_p = params["w1_p"], params["b1_p"]   # (Kp, Hp) bf16, (1, Hp) f32
    w2_p, b2_p = params["w2_p"], params["b2_p"]   # (Hp, Hp) bf16, (1, Hp) f32

    M, K = x.shape
    H = params["w1"].shape[1]                     # logical (unpadded) out dim
    Kp, Hp = w1_p.shape

    Mp, tm_eff, grid_n = _choose_tiling(M, tm)

    # Only the activation may need padding at call time (sublane rows + lanes).
    if Mp != M or Kp != K:
        x_p = jnp.pad(x, ((0, Mp - M), (0, Kp - K)))
    else:
        x_p = x

    # ---- VMEM budget: actual footprint + 30% headroom, capped for v7x ------
    vmem_bytes = (
        2 * tm_eff * Kp * 4            # x tile, double-buffered (f32)
        + 2 * tm_eff * Hp * 4          # out tile, double-buffered (f32)
        + Kp * Hp * 2 + Hp * Hp * 2    # bf16 weights, single-buffered
        + 2 * Hp * 4                   # biases
        + tm_eff * Kp * 2              # in-kernel bf16 cast of x tile
        + tm_eff * Hp * (4 + 2)        # f32 hidden + its bf16 cast
    )
    vmem_limit = min(48 << 20, max(int(vmem_bytes * 1.3), 16 << 20))

    flops = 2 * Mp * Kp * Hp + 2 * Mp * Hp * Hp
    bytes_accessed = (
        4 * Mp * Kp + 2 * (Kp * Hp + Hp * Hp) + 4 * 2 * Hp + 4 * Mp * Hp)

    weight_mode = pl.Buffered(1)   # grid-invariant operands: no double buffer

    out_p = pl.pallas_call(
        functools.partial(_mlp2_kernel, alpha=alpha),
        out_shape=jax.ShapeDtypeStruct((Mp, Hp), jnp.float32),
        grid_spec=pltpu.PrefetchScalarGridSpec(
            num_scalar_prefetch=0,
            grid=(grid_n,),
            in_specs=[
                pl.BlockSpec((tm_eff, Kp), lambda i: (i, 0)),   # x (pipelined)
                pl.BlockSpec((Kp, Hp), lambda i: (0, 0),
                             pipeline_mode=weight_mode),        # w1 (resident)
                pl.BlockSpec((1, Hp), lambda i: (0, 0),
                             pipeline_mode=weight_mode),        # b1
                pl.BlockSpec((Hp, Hp), lambda i: (0, 0),
                             pipeline_mode=weight_mode),        # w2 (resident)
                pl.BlockSpec((1, Hp), lambda i: (0, 0),
                             pipeline_mode=weight_mode),        # b2
            ],
            out_specs=pl.BlockSpec((tm_eff, Hp), lambda i: (i, 0)),
        ),
        compiler_params=pltpu.CompilerParams(
            dimension_semantics=("parallel",),      # megacore split on v7x
            vmem_limit_bytes=vmem_limit,
        ),
        cost_estimate=pl.CostEstimate(
            flops=flops, transcendentals=0, bytes_accessed=bytes_accessed),
    )(x_p, w1_p, b1_p, w2_p, b2_p)

    return out_p[:M, :H]


# ----------------------------------------------------------------------------
# Parameter init: weights pre-transposed to (in_features, out_features), and
# the padded / bf16 kernel operands are built ONCE here (hoisted out of the
# per-call path).
# ----------------------------------------------------------------------------
def init_mnist_generator_params(key, out_channels, latent_size):
    k1, k2, k3, k4 = jax.random.split(key, 4)
    scale = 0.1
    w1 = scale * jax.random.normal(k1, (latent_size, out_channels), jnp.float32)
    b1 = scale * jax.random.normal(k2, (out_channels,), jnp.float32)
    w2 = scale * jax.random.normal(k3, (out_channels, out_channels), jnp.float32)
    b2 = scale * jax.random.normal(k4, (out_channels,), jnp.float32)

    K, H = latent_size, out_channels
    Kp, Hp = _round_up(K, _LANE), _round_up(H, _LANE)

    return {
        # logical f32 params (reference / training use)
        "w1": w1, "b1": b1, "w2": w2, "b2": b2,
        # pre-padded kernel operands (weights bf16, biases f32, lane-dense)
        "w1_p": jnp.pad(w1, ((0, Kp - K), (0, Hp - H))).astype(jnp.bfloat16),
        "b1_p": jnp.pad(b1, (0, Hp - H)).reshape(1, Hp),
        "w2_p": jnp.pad(w2, ((0, Hp - H), (0, Hp - H))).astype(jnp.bfloat16),
        "b2_p": jnp.pad(b2, (0, Hp - H)).reshape(1, Hp),
    }


# ----------------------------------------------------------------------------
# Pure-JAX reference (f32) for correctness check
# ----------------------------------------------------------------------------
def mnist_generator_reference(params, x, alpha=0.2):
    h = _leaky(x @ params["w1"] + params["b1"], alpha)
    return _leaky(h @ params["w2"] + params["b2"], alpha)


# ----------------------------------------------------------------------------
if __name__ == "__main__":
    batch, latent_size, out_channels = 2, 8, 32

    key = jax.random.PRNGKey(0)
    k_params, k_x, k_x2 = jax.random.split(key, 3)
    params = init_mnist_generator_params(k_params, out_channels, latent_size)

    fwd = jax.jit(mnist_generator_forward)

    # small-batch case (grid == 1)
    x = jax.random.normal(k_x, (batch, latent_size), dtype=jnp.float32)
    out = jax.block_until_ready(fwd(params, x))
    assert out.shape == (batch, out_channels), out.shape
    ref = jax.block_until_ready(mnist_generator_reference(params, x))
    # bf16 MXU path -> looser tolerance than pure f32
    assert jnp.allclose(out, ref, rtol=2e-2, atol=2e-2), float(
        jnp.max(jnp.abs(out - ref)))

    # moderate-batch case exercising grid >= 2 and ragged M padding
    x2 = jax.random.normal(k_x2, (300, latent_size), dtype=jnp.float32)
    out2 = jax.block_until_ready(fwd(params, x2))
    assert out2.shape == (300, out_channels), out2.shape
    ref2 = jax.block_until_ready(mnist_generator_reference(params, x2))
    assert jnp.allclose(out2, ref2, rtol=2e-2, atol=2e-2), float(
        jnp.max(jnp.abs(out2 - ref2)))

    print("KERNEL_OK")
</pallas_src>

<mosaic_0001>
module attributes {stable_mosaic.version = 11 : i64} {
  func.func @_mlp2_kernel(%arg0: i32, %arg1: memref<8x128xf32, #tpu.memory_space<vmem>>, %arg2: memref<128x128xbf16, #tpu.memory_space<vmem>>, %arg3: memref<1x128xf32, #tpu.memory_space<vmem>>, %arg4: memref<128x128xbf16, #tpu.memory_space<vmem>>, %arg5: memref<1x128xf32, #tpu.memory_space<vmem>>, %arg6: memref<8x128xf32, #tpu.memory_space<vmem>>) attributes {dimension_semantics = [#tpu.dimension_semantics<parallel>], iteration_bounds = array<i64: 1>, scalar_prefetch = 0 : i64, scratch_operands = 0 : i64, tpu.core_type = #tpu.core_type<tc>, window_params = [{transform_indices = @transform_0, window_bounds = array<i64: 8, 128>}, {pipeline_mode = #tpu.pipeline_mode<synchronous>, transform_indices = @transform_1, window_bounds = array<i64: 128, 128>}, {pipeline_mode = #tpu.pipeline_mode<synchronous>, transform_indices = @transform_2, window_bounds = array<i64: 1, 128>}, {pipeline_mode = #tpu.pipeline_mode<synchronous>, transform_indices = @transform_3, window_bounds = array<i64: 128, 128>}, {pipeline_mode = #tpu.pipeline_mode<synchronous>, transform_indices = @transform_4, window_bounds = array<i64: 1, 128>}, {transform_indices = @transform_5, window_bounds = array<i64: 8, 128>}]} {
    %c0 = arith.constant 0 : index
    %c0_0 = arith.constant 0 : index
    %0 = vector.load %arg1[%c0, %c0_0] : memref<8x128xf32, #tpu.memory_space<vmem>>, vector<8x128xf32>
    %1 = arith.truncf %0 : vector<8x128xf32> to vector<8x128xbf16>
    %c0_1 = arith.constant 0 : index
    %c0_2 = arith.constant 0 : index
    %2 = vector.load %arg2[%c0_1, %c0_2] : memref<128x128xbf16, #tpu.memory_space<vmem>>, vector<128x128xbf16>
    %cst = arith.constant dense<0.000000e+00> : vector<8x128xf32>
    %3 = tpu.matmul %1, %2, %cst {dimension_numbers = #tpu.dot_dimension_numbers<[1], [0], [0], [1], [0, 0, 1, 1], [], []>} : vector<8x128xbf16>, vector<128x128xbf16>, vector<8x128xf32> -> vector<8x128xf32>
    %c0_3 = arith.constant 0 : index
    %c0_4 = arith.constant 0 : index
    %4 = vector.load %arg3[%c0_3, %c0_4] : memref<1x128xf32, #tpu.memory_space<vmem>>, vector<1x128xf32>
    %5 = vector.broadcast %4 : vector<1x128xf32> to vector<8x128xf32>
    %6 = arith.addf %3, %5 : vector<8x128xf32>
    %cst_5 = arith.constant 0.000000e+00 : f32
    %7 = vector.broadcast %cst_5 : f32 to vector<8x128xf32>
    %8 = arith.cmpf oge, %6, %7 : vector<8x128xf32>
    %cst_6 = arith.constant 2.000000e-01 : f32
    %9 = vector.broadcast %cst_6 : f32 to vector<8x128xf32>
    %10 = arith.mulf %9, %6 : vector<8x128xf32>
    %11 = arith.select %8, %6, %10 : vector<8x128xi1>, vector<8x128xf32>
    %12 = arith.truncf %11 : vector<8x128xf32> to vector<8x128xbf16>
    %c0_7 = arith.constant 0 : index
    %c0_8 = arith.constant 0 : index
    %13 = vector.load %arg4[%c0_7, %c0_8] : memref<128x128xbf16, #tpu.memory_space<vmem>>, vector<128x128xbf16>
    %cst_9 = arith.constant dense<0.000000e+00> : vector<8x128xf32>
    %14 = tpu.matmul %12, %13, %cst_9 {dimension_numbers = #tpu.dot_dimension_numbers<[1], [0], [0], [1], [0, 0, 1, 1], [], []>} : vector<8x128xbf16>, vector<128x128xbf16>, vector<8x128xf32> -> vector<8x128xf32>
    %c0_10 = arith.constant 0 : index
    %c0_11 = arith.constant 0 : index
    %15 = vector.load %arg5[%c0_10, %c0_11] : memref<1x128xf32, #tpu.memory_space<vmem>>, vector<1x128xf32>
    %16 = vector.broadcast %15 : vector<1x128xf32> to vector<8x128xf32>
    %17 = arith.addf %14, %16 : vector<8x128xf32>
    %cst_12 = arith.constant 0.000000e+00 : f32
    %18 = vector.broadcast %cst_12 : f32 to vector<8x128xf32>
    %19 = arith.cmpf oge, %17, %18 : vector<8x128xf32>
    %cst_13 = arith.constant 2.000000e-01 : f32
    %20 = vector.broadcast %cst_13 : f32 to vector<8x128xf32>
    %21 = arith.mulf %20, %17 : vector<8x128xf32>
    %22 = arith.select %19, %17, %21 : vector<8x128xi1>, vector<8x128xf32>
    %c0_14 = arith.constant 0 : index
    %c0_15 = arith.constant 0 : index
    %23 = vector.load %arg6[%c0_14, %c0_15] : memref<8x128xf32, #tpu.memory_space<vmem>>, vector<8x128xf32>
    tpu.vector_store %arg6[%c0_14, %c0_15], %22 {strides = array<i32>} : memref<8x128xf32, #tpu.memory_space<vmem>>, vector<8x128xf32>,
    return
  }
  func.func @transform_0(%arg0: i32) -> (i32, i32) {
    %c0_i32 = arith.constant 0 : i32
    %c0_i32_0 = arith.constant 0 : i32
    return %arg0, %c0_i32 : i32, i32
  }
  func.func @transform_1(%arg0: i32) -> (i32, i32) {
    %c0_i32 = arith.constant 0 : i32
    %c0_i32_0 = arith.constant 0 : i32
    %c0_i32_1 = arith.constant 0 : i32
    return %c0_i32, %c0_i32_0 : i32, i32
  }
  func.func @transform_2(%arg0: i32) -> (i32, i32) {
    %c0_i32 = arith.constant 0 : i32
    %c0_i32_0 = arith.constant 0 : i32
    %c0_i32_1 = arith.constant 0 : i32
    return %c0_i32, %c0_i32_0 : i32, i32
  }
  func.func @transform_3(%arg0: i32) -> (i32, i32) {
    %c0_i32 = arith.constant 0 : i32
    %c0_i32_0 = arith.constant 0 : i32
    %c0_i32_1 = arith.constant 0 : i32
    return %c0_i32, %c0_i32_0 : i32, i32
  }
  func.func @transform_4(%arg0: i32) -> (i32, i32) {
    %c0_i32 = arith.constant 0 : i32
    %c0_i32_0 = arith.constant 0 : i32
    %c0_i32_1 = arith.constant 0 : i32
    return %c0_i32, %c0_i32_0 : i32, i32
  }
  func.func @transform_5(%arg0: i32) -> (i32, i32) {
    %c0_i32 = arith.constant 0 : i32
    %c0_i32_0 = arith.constant 0 : i32
    return %arg0, %c0_i32 : i32, i32
  }
}

</mosaic_0001>

<llo_original>
// kernel: mnist_generator_forward.1
$region0: #{mnist_generator_forward.1}
  #allocation0 [shape = 'u32[]', space=smem, size = 0x4, offset = 0x4, fixed_abs, tag = 'smem constant byte address 0x4 - core index']
  #allocation1 [shape = 'u32[144,128]{1,0:T(1,128)}', space=vmem, size = 0x12000, scoped, tag = 'internal scratch']
  %s0 = inlined_call_operand.vmem [shape: f32[8,128], index: 0, kind: input, shape index: {}]
  %s1 = inlined_call_operand.hbm [shape: bf16[128,128], index: 1, kind: input, shape index: {}]
  %s2 = inlined_call_operand.vmem [shape: f32[1,128], index: 2, kind: input, shape index: {}]
  %s3 = inlined_call_operand.hbm [shape: bf16[128,128], index: 3, kind: input, shape index: {}]
  %s4 = inlined_call_operand.vmem [shape: f32[1,128], index: 4, kind: input, shape index: {}]
  %s5 = inlined_call_operand.vmem [shape: f32[8,128], index: 5, kind: output, shape index: {}]
  %s6 = sld [smem:[#allocation0]]
  $region38: #{mnist_generator_forward.1} parent=0
    _
  %s8 = ssub.s32 1, %s6
  %s9 = scalar_select 0, %s8, %s6
  $region1: #{mnist_generator_forward.1} parent=0
    #allocation2 [shape = 'u8[32768]{0}', space=vmem, size = 0x8000, scoped, tag = 'input window, operand 1, single buffered']
    #allocation3 [shape = 's32[1]{0}', space=sflag, size = 0x4, scoped, tag = 'scoped memory for mnist_generator_forward.1']
    #allocation4 [shape = 'u8[32768]{0}', space=vmem, size = 0x8000, scoped, tag = 'input window, operand 3, single buffered']
    #allocation5 [shape = 's32[1]{0}', space=sflag, size = 0x4, scoped, tag = 'scoped memory for mnist_generator_forward.1']
    %10 = vsyncpa [#allocation3], 0
    %11 = vsyncpa [#allocation5], 0
    // Predicated region
    $region2: #{mnist_generator_forward.1} parent=1 // pred_check
      _
    $region3: #{mnist_generator_forward.1} parent=1 // pred_check_branch
      %13 = sbr.rel (0) target = $region5
    $region4: #{mnist_generator_forward.1} parent=1 // pred_region
      _
    $region5: #{mnist_generator_forward.1} parent=1 // pred_fallthru
      _
    // Predicated region
    $region6: #{mnist_generator_forward.1} parent=1 // pred_check
      _
    $region7: #{mnist_generator_forward.1} parent=1 // pred_check_branch
      %15 = sbr.rel (0) target = $region9
    $region8: #{mnist_generator_forward.1} parent=1 // pred_region
      %s17 = ssub.s32 1024, 1024
      %18 = vsyncadd [#allocation3], %s17
      %s19 = sshll.u32 [#allocation2], 4
      %s20 = int_to_ptr.vmem [resolvable:$true] %s19
      %25 = dma.hbm_to_vmem [thread:$0]  %s1, 1024, %s20, [#allocation3], 64, 64, 4
    $region9: #{mnist_generator_forward.1} parent=1 // pred_fallthru
      _
    // Predicated region
    $region10: #{mnist_generator_forward.1} parent=1 // pred_check
      _
    $region11: #{mnist_generator_forward.1} parent=1 // pred_check_branch
      %27 = sbr.rel (0) target = $region13
    $region12: #{mnist_generator_forward.1} parent=1 // pred_region
      _
    $region13: #{mnist_generator_forward.1} parent=1 // pred_fallthru
      _
    // Predicated region
    $region14: #{mnist_generator_forward.1} parent=1 // pred_check
      _
    $region15: #{mnist_generator_forward.1} parent=1 // pred_check_branch
      %29 = sbr.rel (0) target = $region17
    $region16: #{mnist_generator_forward.1} parent=1 // pred_region
      %s31 = ssub.s32 1024, 1024
      %32 = vsyncadd [#allocation5], %s31
      %s33 = sshll.u32 [#allocation4], 4
      %s34 = int_to_ptr.vmem [resolvable:$true] %s33
      %39 = dma.hbm_to_vmem [thread:$0]  %s3, 1024, %s34, [#allocation5], 64, 64, 4
    $region17: #{mnist_generator_forward.1} parent=1 // pred_fallthru
      _
    // Predicated region
    $region18: #{mnist_generator_forward.1} parent=1 // pred_check
      _
    $region19: #{mnist_generator_forward.1} parent=1 // pred_check_branch
      %41 = sbr.rel (0) target = $region21
    $region20: #{mnist_generator_forward.1} parent=1 // pred_region
      _
    $region21: #{mnist_generator_forward.1} parent=1 // pred_fallthru
      _
    // Predicated region
    $region22: #{mnist_generator_forward.1} parent=1 // pred_check
      _
    $region23: #{mnist_generator_forward.1} parent=1 // pred_check_branch
      %43 = sbr.rel (0) target = $region25
    $region24: #{mnist_generator_forward.1} parent=1 // pred_region
      %44 = dma.done [#allocation3], 1024
    $region25: #{mnist_generator_forward.1} parent=1 // pred_fallthru
      _
    // Predicated region
    $region26: #{mnist_generator_forward.1} parent=1 // pred_check
      _
    $region27: #{mnist_generator_forward.1} parent=1 // pred_check_branch
      %46 = sbr.rel (0) target = $region29
    $region28: #{mnist_generator_forward.1} parent=1 // pred_region
      %47 = dma.done [#allocation5], 1024
    $region29: #{mnist_generator_forward.1} parent=1 // pred_fallthru
      _
    %v49 = vld [vmem:[%s0] sm:$0xff]
    %v50 = vpack.c.bf16 %v49, %v49
    %v51 = vld [vmem:[#allocation2] sm:$0xf]
    %v52 = vld [vmem:[#allocation2 + $0x4] sm:$0xf]
    %v53 = vld [vmem:[#allocation2 + $0x8] sm:$0xf]
    %v54 = vld [vmem:[#allocation2 + $0xc] sm:$0xf]
    %v55 = vld [vmem:[#allocation2 + $0x10] sm:$0xf]
    %v56 = vld [vmem:[#allocation2 + $0x14] sm:$0xf]
    %v57 = vld [vmem:[#allocation2 + $0x18] sm:$0xf]
    %v58 = vld [vmem:[#allocation2 + $0x1c] sm:$0xf]
    %v59 = vld [vmem:[#allocation2 + $0x20] sm:$0xf]
    %v60 = vld [vmem:[#allocation2 + $0x24] sm:$0xf]
    %v61 = vld [vmem:[#allocation2 + $0x28] sm:$0xf]
    %v62 = vld [vmem:[#allocation2 + $0x2c] sm:$0xf]
    %v63 = vld [vmem:[#allocation2 + $0x30] sm:$0xf]
    %v64 = vld [vmem:[#allocation2 + $0x34] sm:$0xf]
    %v65 = vld [vmem:[#allocation2 + $0x38] sm:$0xf]
    %v66 = vld [vmem:[#allocation2 + $0x3c] sm:$0xf]
    %v67 = vld [vmem:[%s2] sm:$0x1]
    %v69 = vlaneseq
    %v70 = vshrl.u32 %v69, 7
    %v71 = vsub.s32 0, %v70
    %v72 = vrot.slane %v67, %v71
    %v90 = vunpack.c.l.b16 %v51
    %v91 = vunpack.c.l.b16 %v52
    %v92 = vunpack.c.l.b16 %v53
    %v93 = vunpack.c.l.b16 %v54
    %v94 = vunpack.c.l.b16 %v55
    %v95 = vunpack.c.l.b16 %v56
    %v96 = vunpack.c.l.b16 %v57
    %v97 = vunpack.c.l.b16 %v58
    %v98 = vunpack.c.l.b16 %v59
    %v99 = vunpack.c.l.b16 %v60
    %v100 = vunpack.c.l.b16 %v61
    %v101 = vunpack.c.l.b16 %v62
    %v102 = vunpack.c.l.b16 %v63
    %v103 = vunpack.c.l.b16 %v64
    %v104 = vunpack.c.l.b16 %v65
    %v105 = vunpack.c.l.b16 %v66
    %v106 = vpack.c.b16 %v91, %v90
    %v107 = vpack.c.b16 %v93, %v92
    %v108 = vpack.c.b16 %v95, %v94
    %v109 = vpack.c.b16 %v97, %v96
    %v110 = vpack.c.b16 %v99, %v98
    %v111 = vpack.c.b16 %v101, %v100
    %v112 = vpack.c.b16 %v103, %v102
    %v113 = vpack.c.b16 %v105, %v104
    %122 = vmatprep.subr.bf16.mxu0 0
    %123 = vmatpush1.bf16.msra.mxu0 %v113
    %124 = vmatprep.subr.bf16.mxu0 0
    %125 = vmatpush1.bf16.msra.mxu0 %v112
    %126 = vmatprep.subr.bf16.mxu0 0
    %127 = vmatpush1.bf16.msra.mxu0 %v111
    %128 = vmatprep.subr.bf16.mxu0 0
    %129 = vmatpush1.bf16.msra.mxu0 %v110
    %130 = vmatprep.subr.bf16.mxu0 0
    %131 = vmatpush1.bf16.msra.mxu0 %v109
    %132 = vmatprep.subr.bf16.mxu0 0
    %133 = vmatpush1.bf16.msra.mxu0 %v108
    %134 = vmatprep.subr.bf16.mxu0 0
    %135 = vmatpush1.bf16.msra.mxu0 %v107
    %136 = vmatprep.subr.bf16.mxu0 0
    %137 = vmatpush1.bf16.msra.mxu0 %v106
    %138 = vmatprep.subr.bf16.mxu0 0
    %139 = vmatpush2.bf16.msra.mxu0 0
    %140 = vmatprep.subr.bf16.mxu0 0
    %141 = vmatpush2.bf16.msra.mxu0 0
    %142 = vmatprep.subr.bf16.mxu0 0
    %143 = vmatpush2.bf16.msra.mxu0 0
    %144 = vmatprep.subr.bf16.mxu0 0
    %145 = vmatpush2.bf16.msra.mxu0 0
    %146 = vmatprep.subr.bf16.mxu0 0
    %147 = vmatpush2.bf16.msra.mxu0 0
    %148 = vmatprep.subr.bf16.mxu0 0
    %149 = vmatpush2.bf16.msra.mxu0 0
    %150 = vmatprep.subr.bf16.mxu0 0
    %151 = vmatpush2.bf16.msra.mxu0 0
    %152 = vmatprep.subr.bf16.mxu0 0
    %153 = vmatpush2.bf16.msra.mxu0 0
    %154 = vmatprep.mubr.bf16.mxu0 0
    %155 = vmatmul.mubr.bf16.gmra.mxu0 %v50
    %v156 = vpop.f32.mrf.mxu0
    %v157 = vadd.f32 %v72, %v156
    %v158 = vpop.f32.mrf.mxu0
    %v159 = vpop.f32.mrf.mxu0
    %v160 = vpop.f32.mrf.mxu0
    %161 = vdwg.mxu0
    %vm162 = vcmp.ge.f32.partialorder %v157, 0.0
    %v163 = vmul.f32 %v157, 0.2
    %v164 = vsel %vm162, %v157, %v163
    %v165 = vpack.c.bf16 %v164, %v164
    %v166 = vld [vmem:[#allocation4] sm:$0xf]
    %v167 = vld [vmem:[#allocation4 + $0x4] sm:$0xf]
    %v168 = vld [vmem:[#allocation4 + $0x8] sm:$0xf]
    %v169 = vld [vmem:[#allocation4 + $0xc] sm:$0xf]
    %v170 = vld [vmem:[#allocation4 + $0x10] sm:$0xf]
    %v171 = vld [vmem:[#allocation4 + $0x14] sm:$0xf]
    %v172 = vld [vmem:[#allocation4 + $0x18] sm:$0xf]
    %v173 = vld [vmem:[#allocation4 + $0x1c] sm:$0xf]
    %v174 = vld [vmem:[#allocation4 + $0x20] sm:$0xf]
    %v175 = vld [vmem:[#allocation4 + $0x24] sm:$0xf]
    %v176 = vld [vmem:[#allocation4 + $0x28] sm:$0xf]
    %v177 = vld [vmem:[#allocation4 + $0x2c] sm:$0xf]
    %v178 = vld [vmem:[#allocation4 + $0x30] sm:$0xf]
    %v179 = vld [vmem:[#allocation4 + $0x34] sm:$0xf]
    %v180 = vld [vmem:[#allocation4 + $0x38] sm:$0xf]
    %v181 = vld [vmem:[#allocation4 + $0x3c] sm:$0xf]
    %v182 = vld [vmem:[%s4] sm:$0x1]
    %v184 = vlaneseq
    %v185 = vshrl.u32 %v184, 7
    %v186 = vsub.s32 0, %v185
    %v187 = vrot.slane %v182, %v186
    %v205 = vunpack.c.l.b16 %v166
    %v206 = vunpack.c.l.b16 %v167
    %v207 = vunpack.c.l.b16 %v168
    %v208 = vunpack.c.l.b16 %v169
    %v209 = vunpack.c.l.b16 %v170
    %v210 = vunpack.c.l.b16 %v171
    %v211 = vunpack.c.l.b16 %v172
    %v212 = vunpack.c.l.b16 %v173
    %v213 = vunpack.c.l.b16 %v174
    %v214 = vunpack.c.l.b16 %v175
    %v215 = vunpack.c.l.b16 %v176
    %v216 = vunpack.c.l.b16 %v177
    %v217 = vunpack.c.l.b16 %v178
    %v218 = vunpack.c.l.b16 %v179
    %v219 = vunpack.c.l.b16 %v180
    %v220 = vunpack.c.l.b16 %v181
    %v221 = vpack.c.b16 %v206, %v205
    %v222 = vpack.c.b16 %v208, %v207
    %v223 = vpack.c.b16 %v210, %v209
    %v224 = vpack.c.b16 %v212, %v211
    %v225 = vpack.c.b16 %v214, %v213
    %v226 = vpack.c.b16 %v216, %v215
    %v227 = vpack.c.b16 %v218, %v217
    %v228 = vpack.c.b16 %v220, %v219
    %237 = vmatprep.subr.bf16.mxu0 0
    %238 = vmatpush1.bf16.msra.mxu0 %v228
    %239 = vmatprep.subr.bf16.mxu0 0
    %240 = vmatpush1.bf16.msra.mxu0 %v227
    %241 = vmatprep.subr.bf16.mxu0 0
    %242 = vmatpush1.bf16.msra.mxu0 %v226
    %243 = vmatprep.subr.bf16.mxu0 0
    %244 = vmatpush1.bf16.msra.mxu0 %v225
    %245 = vmatprep.subr.bf16.mxu0 0
    %246 = vmatpush1.bf16.msra.mxu0 %v224
    %247 = vmatprep.subr.bf16.mxu0 0
    %248 = vmatpush1.bf16.msra.mxu0 %v223
    %249 = vmatprep.subr.bf16.mxu0 0
    %250 = vmatpush1.bf16.msra.mxu0 %v222
    %251 = vmatprep.subr.bf16.mxu0 0
    %252 = vmatpush1.bf16.msra.mxu0 %v221
    %253 = vmatprep.subr.bf16.mxu0 0
    %254 = vmatpush2.bf16.msra.mxu0 0
    %255 = vmatprep.subr.bf16.mxu0 0
    %256 = vmatpush2.bf16.msra.mxu0 0
    %257 = vmatprep.subr.bf16.mxu0 0
    %258 = vmatpush2.bf16.msra.mxu0 0
    %259 = vmatprep.subr.bf16.mxu0 0
    %260 = vmatpush2.bf16.msra.mxu0 0
    %261 = vmatprep.subr.bf16.mxu0 0
    %262 = vmatpush2.bf16.msra.mxu0 0
    %263 = vmatprep.subr.bf16.mxu0 0
    %264 = vmatpush2.bf16.msra.mxu0 0
    %265 = vmatprep.subr.bf16.mxu0 0
    %266 = vmatpush2.bf16.msra.mxu0 0
    %267 = vmatprep.subr.bf16.mxu0 0
    %268 = vmatpush2.bf16.msra.mxu0 0
    %269 = vmatprep.mubr.bf16.mxu0 0
    %270 = vmatmul.mubr.bf16.gmra.mxu0 %v165
    %v271 = vpop.f32.mrf.mxu0
    %v272 = vadd.f32 %v187, %v271
    %v273 = vpop.f32.mrf.mxu0
    %v274 = vpop.f32.mrf.mxu0
    %v275 = vpop.f32.mrf.mxu0
    %276 = vdwg.mxu0
    %vm277 = vcmp.ge.f32.partialorder %v272, 0.0
    %v278 = vmul.f32 %v272, 0.2
    %v279 = vsel %vm277, %v272, %v278
    %280 = vst [vmem:[%s5] sm:$0xff] %v279
    // Predicated region
    $region30: #{mnist_generator_forward.1} parent=1 // pred_check
      _
    $region31: #{mnist_generator_forward.1} parent=1 // pred_check_branch
      %282 = sbr.rel (0) target = $region33
    $region32: #{mnist_generator_forward.1} parent=1 // pred_region
      _
    $region33: #{mnist_generator_forward.1} parent=1 // pred_fallthru
      _
    // Predicated region
    $region34: #{mnist_generator_forward.1} parent=1 // pred_check
      _
    $region35: #{mnist_generator_forward.1} parent=1 // pred_check_branch
      %284 = sbr.rel (0) target = $region37
    $region36: #{mnist_generator_forward.1} parent=1 // pred_region
      _
    $region37: #{mnist_generator_forward.1} parent=1 // pred_fallthru
      _
    %285 = vsyncpa [#allocation3], 1
    %286 = vsyncpa [#allocation5], 1

</llo_original>
